<compile_context>
chip_gen: v7x
topology: tpu7x:2x2x1
jax: 0.10.0
libtpu: 0.0.40
codegen_flags: <defaults>
</compile_context>

<pallas_src>
import jax
import jax.numpy as jnp
import numpy as np
from jax.experimental import pallas as pl
from jax.experimental.pallas import tpu as pltpu

# ----------------------------------------------------------------------------
# Deterministic synthetic NORM_VEC (the real one is a fixed numpy constant of
# per-element normalization counts). Length = number of formula features =
# last dim of the input. All entries > 0.
# ----------------------------------------------------------------------------
NUM_FEATURES = 16
NORM_VEC = (np.arange(1, NUM_FEATURES + 1, dtype=np.float32) * 3.0 + 1.0)

# Base-class learned extra embeddings: unused by FloatFeaturizer.forward.
# TODO(synk): IntFeaturizer gather + extra-embedding path not exercised here.
NUM_EXTRA_EMBEDDINGS = 1
EMBEDDING_DIM = 1
_extra_embeddings = jax.random.normal(
    jax.random.PRNGKey(1234), (NUM_EXTRA_EMBEDDINGS, EMBEDDING_DIM), dtype=jnp.float32
)


def _round_up(x: int, m: int) -> int:
    return ((x + m - 1) // m) * m


# ----------------------------------------------------------------------------
# Pallas kernel: x * inv_norm with a (1, C) row broadcast over TM sublanes.
# Cast fused in-kernel; compute in f32 (v5e VPU has no bf16 ALU).
# ----------------------------------------------------------------------------
def _float_featurizer_kernel(x_ref, inv_ref, o_ref):
    x = x_ref[...].astype(jnp.float32)
    o_ref[...] = (x * inv_ref[...]).astype(o_ref.dtype)


def float_featurizer_forward(
    x: jax.Array,
    norm_vec: jax.Array,
    *,
    lane_width: int = 512,        # C: multiple of 128 and of len(norm_vec)
    max_rows_per_block: int = 512,  # TM cap: multiple of 8
) -> jax.Array:
    """Pallas equivalent of FloatFeaturizer.forward.

    x: array of shape (..., F) with F == norm_vec.shape[0]
    returns x / norm_vec broadcast over the last axis (result dtype follows
    standard promotion of x.dtype with norm_vec.dtype, matching torch's
    float division result for float/int inputs).
    """
    feat = int(norm_vec.shape[0])
    assert x.shape[-1] == feat, "last dim must match NORM_VEC length"

    C = lane_width
    assert C % 128 == 0 and C % feat == 0, "lane_width must be multiple of 128 and F"
    assert max_rows_per_block % 8 == 0

    out_dtype = jnp.result_type(x.dtype, norm_vec.dtype)

    # ---- lane-dense reshape: flatten -> (rows_padded, C) ----
    n = int(np.prod(x.shape))
    rows = -(-n // C)                                   # ceil
    tm = min(max_rows_per_block, _round_up(rows, 8))    # block rows (mult of 8)
    rows_padded = _round_up(rows, tm)
    n_padded = rows_padded * C

    x_flat = x.reshape(-1)
    if n_padded != n:
        x_flat = jnp.pad(x_flat, (0, n_padded - n))
    x2d = x_flat.reshape(rows_padded, C)

    # Per-feature reciprocal tiled across the lane axis (exact: feat | C).
    inv_row = jnp.tile(1.0 / norm_vec.astype(jnp.float32), C // feat).reshape(1, C)

    grid = (rows_padded // tm,)

    out2d = pl.pallas_call(
        _float_featurizer_kernel,
        out_shape=jax.ShapeDtypeStruct((rows_padded, C), out_dtype),
        grid_spec=pl.GridSpec(
            grid=grid,
            in_specs=[
                pl.BlockSpec((tm, C), lambda i: (i, 0)),
                # constant index_map -> DMA'd once, stays resident across steps
                pl.BlockSpec((1, C), lambda i: (0, 0)),
            ],
            out_specs=pl.BlockSpec((tm, C), lambda i: (i, 0)),
        ),
        compiler_params=pltpu.CompilerParams(
            dimension_semantics=("parallel",),
            vmem_limit_bytes=32 * 1024 * 1024,
        ),
    )(x2d, inv_row)

    out_flat = out2d.reshape(-1)
    if n_padded != n:
        out_flat = out_flat[:n]
    return out_flat.reshape(x.shape)


if __name__ == "__main__":
    key = jax.random.PRNGKey(0)
    norm_vec = jnp.asarray(NORM_VEC)

    # --- small primary test (B, S, F) ---
    B, S, F = 2, 8, NUM_FEATURES
    x = jax.random.randint(key, (B, S, F), minval=0, maxval=20).astype(jnp.float32)

    out = float_featurizer_forward(x, norm_vec)
    out = jax.block_until_ready(out)

    ref = x / norm_vec.reshape(1, 1, F)
    np.testing.assert_allclose(np.asarray(out), np.asarray(ref), rtol=1e-5, atol=1e-6)
    assert out.shape == (B, S, F)
    assert out.dtype == jnp.float32

    # --- secondary test: exercises multi-block grid + ragged padding path ---
    key2 = jax.random.PRNGKey(0)
    x2 = jax.random.randint(key2, (4, 40, F), minval=0, maxval=20).astype(jnp.float32)
    out2 = float_featurizer_forward(
        x2, norm_vec, lane_width=128, max_rows_per_block=8
    )
    out2 = jax.block_until_ready(out2)
    ref2 = x2 / norm_vec.reshape(1, 1, F)
    np.testing.assert_allclose(np.asarray(out2), np.asarray(ref2), rtol=1e-5, atol=1e-6)
    assert out2.shape == x2.shape

    print("KERNEL_OK")
</pallas_src>

<mosaic_0001>
module attributes {stable_mosaic.version = 11 : i64} {
  func.func @_float_featurizer_kernel(%arg0: i32, %arg1: memref<8x512xf32, #tpu.memory_space<vmem>>, %arg2: memref<1x512xf32, #tpu.memory_space<vmem>>, %arg3: memref<8x512xf32, #tpu.memory_space<vmem>>) attributes {dimension_semantics = [#tpu.dimension_semantics<parallel>], iteration_bounds = array<i64: 1>, scalar_prefetch = 0 : i64, scratch_operands = 0 : i64, tpu.core_type = #tpu.core_type<tc>, window_params = [{transform_indices = @transform_0, window_bounds = array<i64: 8, 512>}, {pipeline_mode = #tpu.pipeline_mode<synchronous>, transform_indices = @transform_1, window_bounds = array<i64: 1, 512>}, {transform_indices = @transform_2, window_bounds = array<i64: 8, 512>}]} {
    %c0 = arith.constant 0 : index
    %c0_0 = arith.constant 0 : index
    %0 = vector.load %arg1[%c0, %c0_0] : memref<8x512xf32, #tpu.memory_space<vmem>>, vector<8x512xf32>
    %c0_1 = arith.constant 0 : index
    %c0_2 = arith.constant 0 : index
    %1 = vector.load %arg2[%c0_1, %c0_2] : memref<1x512xf32, #tpu.memory_space<vmem>>, vector<1x512xf32>
    %2 = vector.broadcast %1 : vector<1x512xf32> to vector<8x512xf32>
    %3 = arith.mulf %0, %2 : vector<8x512xf32>
    %c0_3 = arith.constant 0 : index
    %c0_4 = arith.constant 0 : index
    %4 = vector.load %arg3[%c0_3, %c0_4] : memref<8x512xf32, #tpu.memory_space<vmem>>, vector<8x512xf32>
    tpu.vector_store %arg3[%c0_3, %c0_4], %3 {strides = array<i32>} : memref<8x512xf32, #tpu.memory_space<vmem>>, vector<8x512xf32>,
    return
  }
  func.func @transform_0(%arg0: i32) -> (i32, i32) {
    %c0_i32 = arith.constant 0 : i32
    %c0_i32_0 = arith.constant 0 : i32
    return %arg0, %c0_i32 : i32, i32
  }
  func.func @transform_1(%arg0: i32) -> (i32, i32) {
    %c0_i32 = arith.constant 0 : i32
    %c0_i32_0 = arith.constant 0 : i32
    %c0_i32_1 = arith.constant 0 : i32
    return %c0_i32, %c0_i32_0 : i32, i32
  }
  func.func @transform_2(%arg0: i32) -> (i32, i32) {
    %c0_i32 = arith.constant 0 : i32
    %c0_i32_0 = arith.constant 0 : i32
    return %arg0, %c0_i32 : i32, i32
  }
}

</mosaic_0001>

<llo_original>
// kernel: tpu_custom_call.1
$region0: #{tpu_custom_call.1}
  #allocation0 [shape = 'u32[]', space=smem, size = 0x4, offset = 0x4, fixed_abs, tag = 'smem constant byte address 0x4 - core index']
  #allocation1 [shape = 'u32[144,128]{1,0:T(1,128)}', space=vmem, size = 0x12000, scoped, tag = 'internal scratch']
  %s0 = inlined_call_operand.hbm [shape: f32[8,512], index: 0, kind: input, shape index: {}]
  %s1 = inlined_call_operand.hbm [shape: f32[1,512], index: 1, kind: input, shape index: {}]
  %s2 = inlined_call_operand.hbm [shape: f32[8,512], index: 2, kind: output, shape index: {}]
  %s3 = sld [smem:[#allocation0]]
  $region26: #{tpu_custom_call.1} parent=0
    _
  %s5 = ssub.s32 1, %s3
  %s6 = scalar_select 0, %s5, %s3
  $region1: #{tpu_custom_call.1} parent=0
    #allocation2 [shape = 'u8[16384]{0}', space=vmem, size = 0x4000, scoped, tag = 'input window, operand 0, single buffered']
    #allocation3 [shape = 's32[1]{0}', space=sflag, size = 0x4, scoped, tag = 'scoped memory for tpu_custom_call.1']
    #allocation4 [shape = 's32[1]{0}', space=sflag, size = 0x4, scoped, tag = 'scoped memory for tpu_custom_call.1']
    #allocation5 [shape = 'u8[2048]{0}', space=vmem, size = 0x800, scoped, tag = 'input window, operand 1, single buffered']
    #allocation6 [shape = 's32[1]{0}', space=sflag, size = 0x4, scoped, tag = 'scoped memory for tpu_custom_call.1']
    #allocation7 [shape = 'u8[16384]{0}', space=vmem, size = 0x4000, scoped, tag = 'output window, operand 0, single buffered']
    %7 = vsyncpa [#allocation3], 0
    %8 = vsyncpa [#allocation6], 0
    %9 = vsyncpa [#allocation4], 0
    // Predicated region
    $region2: #{tpu_custom_call.1} parent=1 // pred_check
      _
    $region3: #{tpu_custom_call.1} parent=1 // pred_check_branch
      %11 = sbr.rel (0) target = $region5
    $region4: #{tpu_custom_call.1} parent=1 // pred_region
      %s13 = ssub.s32 512, 512
      %14 = vsyncadd [#allocation3], %s13
      %s16 = sshll.u32 [#allocation2], 4
      %s17 = int_to_ptr.vmem [resolvable:$true] %s16
      %19 = dma.hbm_to_vmem [thread:$0]  %s0, 512, %s17, [#allocation3]
    $region5: #{tpu_custom_call.1} parent=1 // pred_fallthru
      _
    // Predicated region
    $region6: #{tpu_custom_call.1} parent=1 // pred_check
      _
    $region7: #{tpu_custom_call.1} parent=1 // pred_check_branch
      %21 = sbr.rel (0) target = $region9
    $region8: #{tpu_custom_call.1} parent=1 // pred_region
      %s23 = ssub.s32 64, 64
      %24 = vsyncadd [#allocation6], %s23
      %s26 = sshll.u32 [#allocation5], 4
      %s27 = int_to_ptr.vmem [resolvable:$true] %s26
      %29 = dma.hbm_to_vmem [thread:$0]  %s1, 64, %s27, [#allocation6]
    $region9: #{tpu_custom_call.1} parent=1 // pred_fallthru
      _
    // Predicated region
    $region10: #{tpu_custom_call.1} parent=1 // pred_check
      _
    $region11: #{tpu_custom_call.1} parent=1 // pred_check_branch
      %31 = sbr.rel (0) target = $region13
    $region12: #{tpu_custom_call.1} parent=1 // pred_region
      %32 = dma.done [#allocation3], 512
    $region13: #{tpu_custom_call.1} parent=1 // pred_fallthru
      _
    // Predicated region
    $region14: #{tpu_custom_call.1} parent=1 // pred_check
      _
    $region15: #{tpu_custom_call.1} parent=1 // pred_check_branch
      %34 = sbr.rel (0) target = $region17
    $region16: #{tpu_custom_call.1} parent=1 // pred_region
      %35 = dma.done [#allocation6], 64
    $region17: #{tpu_custom_call.1} parent=1 // pred_fallthru
      _
    %v36 = vld [vmem:[#allocation2] sm:$0xff]
    %v37 = vld [vmem:[#allocation2 + $0x8] sm:$0xff]
    %v38 = vld [vmem:[#allocation2 + $0x10] sm:$0xff]
    %v39 = vld [vmem:[#allocation2 + $0x18] sm:$0xff]
    %v40 = vld [vmem:[#allocation5] sm:$0xf]
    %v42 = vlaneseq
    %v43 = vshrl.u32 %v42, 7
    %v44 = vsub.s32 0, %v43
    %v45 = vrot.slane %v40, %v44
    %v46 = vlaneseq
    %v47 = vshrl.u32 %v46, 7
    %v48 = vsub.s32 1, %v47
    %v49 = vrot.slane %v40, %v48
    %v50 = vlaneseq
    %v51 = vshrl.u32 %v50, 7
    %v52 = vsub.s32 2, %v51
    %v53 = vrot.slane %v40, %v52
    %v54 = vlaneseq
    %v55 = vshrl.u32 %v54, 7
    %v56 = vsub.s32 3, %v55
    %v57 = vrot.slane %v40, %v56
    %v62 = vmul.f32 %v36, %v45
    %v63 = vmul.f32 %v37, %v49
    %v64 = vmul.f32 %v38, %v53
    %v65 = vmul.f32 %v39, %v57
    %66 = vst [vmem:[#allocation7] sm:$0xff] %v62
    %67 = vst [vmem:[#allocation7 + $0x8] sm:$0xff] %v63
    %68 = vst [vmem:[#allocation7 + $0x10] sm:$0xff] %v64
    %69 = vst [vmem:[#allocation7 + $0x18] sm:$0xff] %v65
    // Predicated region
    $region18: #{tpu_custom_call.1} parent=1 // pred_check
      _
    $region19: #{tpu_custom_call.1} parent=1 // pred_check_branch
      %71 = sbr.rel (0) target = $region21
    $region20: #{tpu_custom_call.1} parent=1 // pred_region
      %s73 = ssub.s32 512, 512
      %74 = vsyncadd [#allocation4], %s73
      %s76 = sshll.u32 [#allocation7], 4
      %s77 = int_to_ptr.vmem [resolvable:$true] %s76
      %79 = dma.vmem_to_hbm [thread:$0]  %s77, 512, %s2, [#allocation4]
    $region21: #{tpu_custom_call.1} parent=1 // pred_fallthru
      _
    // Predicated region
    $region22: #{tpu_custom_call.1} parent=1 // pred_check
      _
    $region23: #{tpu_custom_call.1} parent=1 // pred_check_branch
      %81 = sbr.rel (0) target = $region25
    $region24: #{tpu_custom_call.1} parent=1 // pred_region
      %82 = dma.done [#allocation4], 512
    $region25: #{tpu_custom_call.1} parent=1 // pred_fallthru
      _
    %83 = vsyncpa [#allocation3], 1
    %84 = vsyncpa [#allocation6], 1
    %85 = vsyncpa [#allocation4], 1

</llo_original>
